<compile_context>
chip_gen: v5e
topology: v5e:2x2
jax: 0.10.0
libtpu: 0.0.40
codegen_flags: <defaults>
</compile_context>

<pallas_src>
import functools

import jax
import jax.numpy as jnp
from jax.experimental import pallas as pl
from jax.experimental.pallas import tpu as pltpu


def attae_kernel(x_ref, we_ref, be_ref, wdt_ref, bdt_ref,
                 h_ref, out_ref, tpad_ref, *, d_in):
    # encoder: h = relu(x @ We + be)   (bf16 operands, f32 accumulate/epilogue)
    x = x_ref[...]
    h = jnp.dot(x, we_ref[...], preferred_element_type=jnp.float32) + be_ref[...]
    h = jnp.maximum(h, 0.0)
    h_ref[...] = h.astype(h_ref.dtype)

    # fused decoder + transformation: z = h @ [Wd | Wt_pad] + [bd | bt_pad]
    hb = h.astype(wdt_ref.dtype)
    z = jnp.dot(hb, wdt_ref[...], preferred_element_type=jnp.float32) + bdt_ref[...]

    # decoder part: relu ; transformation part: tanh (lane-padded to 128)
    out_ref[...] = jnp.maximum(z[:, :d_in], 0.0).astype(out_ref.dtype)
    tpad_ref[...] = jnp.tanh(z[:, d_in:]).astype(tpad_ref.dtype)


def attae_forward(x, we, be, wd, bd, wt, bt, *, tile_b=256):
    B, D_in = x.shape
    D_hid = we.shape[1]
    D_feat = wt.shape[1]

    LANE = 128
    D_feat_pad = ((D_feat + LANE - 1) // LANE) * LANE

    # --- operand preparation (bf16 matmul operands, f32 biases) ---
    xb = x.astype(jnp.bfloat16)
    web = we.astype(jnp.bfloat16)

    wt_pad = jnp.zeros((D_hid, D_feat_pad), wt.dtype).at[:, :D_feat].set(wt)
    bt_pad = jnp.zeros((1, D_feat_pad), bt.dtype).at[:, :D_feat].set(bt)
    wdt = jnp.concatenate([wd, wt_pad], axis=1).astype(jnp.bfloat16)
    bdt = jnp.concatenate([bd, bt_pad], axis=1).astype(jnp.float32)
    be_f = be.astype(jnp.float32)

    # --- batch tiling (pad batch to a multiple of the tile) ---
    if B >= tile_b:
        tb = tile_b
    else:
        tb = ((B + 7) // 8) * 8           # sublane-aligned tile for small batches
    B_pad = ((B + tb - 1) // tb) * tb
    if B_pad != B:
        xb = jnp.zeros((B_pad, D_in), xb.dtype).at[:B].set(xb)

    D_out2 = D_in + D_feat_pad
    grid = (B_pad // tb,)

    kernel = functools.partial(attae_kernel, d_in=D_in)

    h, out, tpad = pl.pallas_call(
        kernel,
        out_shape=(
            jax.ShapeDtypeStruct((B_pad, D_hid), jnp.float32),      # h
            jax.ShapeDtypeStruct((B_pad, D_in), jnp.float32),       # reconstruction
            jax.ShapeDtypeStruct((B_pad, D_feat_pad), jnp.float32), # t_out (lane-padded)
        ),
        grid=grid,
        in_specs=[
            pl.BlockSpec((tb, D_in), lambda i: (i, 0)),        # x: tiled on batch
            pl.BlockSpec((D_in, D_hid), lambda i: (0, 0)),     # We: resident
            pl.BlockSpec((1, D_hid), lambda i: (0, 0)),        # be
            pl.BlockSpec((D_hid, D_out2), lambda i: (0, 0)),   # [Wd | Wt_pad]: resident
            pl.BlockSpec((1, D_out2), lambda i: (0, 0)),       # [bd | bt_pad]
        ],
        out_specs=(
            pl.BlockSpec((tb, D_hid), lambda i: (i, 0)),
            pl.BlockSpec((tb, D_in), lambda i: (i, 0)),
            pl.BlockSpec((tb, D_feat_pad), lambda i: (i, 0)),
        ),
        compiler_params=pltpu.CompilerParams(
            dimension_semantics=("parallel",),   # lets v7x split batch across its 2 TCs
        ),
    )(xb, web, be_f, wdt, bdt)

    return h[:B], out[:B], tpad[:B, :D_feat]


def attae_reference_bf16(x, we, be, wd, bd, wt, bt):
    """Reference that emulates the kernel's bf16 operand rounding (f32 accumulate)."""
    r = lambda a: a.astype(jnp.bfloat16).astype(jnp.float32)
    h = jnp.maximum(r(x) @ r(we) + be, 0.0)
    hb = r(h)
    out = jnp.maximum(hb @ r(wd) + bd, 0.0)
    t_out = jnp.tanh(hb @ r(wt) + bt)
    return h, out, t_out


if __name__ == "__main__":
    # Small shapes consistent with the module's Linear stack
    # (input_size -> output_size -> {input_size, final_feature_size}).
    B = 8
    INPUT_SIZE = 256          # "input_size"
    OUTPUT_SIZE = 128         # "output_size" (hidden)
    FINAL_FEATURE_SIZE = 64   # "final_feature_size"

    key = jax.random.PRNGKey(0)
    kx, k1, k2, k3, k4, k5, k6 = jax.random.split(key, 7)

    x = jax.random.normal(kx, (B, INPUT_SIZE), dtype=jnp.float32)

    # Deterministic parameter init (stored transposed: (in, out)).
    we = jax.random.normal(k1, (INPUT_SIZE, OUTPUT_SIZE), dtype=jnp.float32) * 0.05
    be = jax.random.normal(k2, (1, OUTPUT_SIZE), dtype=jnp.float32) * 0.05
    wd = jax.random.normal(k3, (OUTPUT_SIZE, INPUT_SIZE), dtype=jnp.float32) * 0.05
    bd = jax.random.normal(k4, (1, INPUT_SIZE), dtype=jnp.float32) * 0.05
    wt = jax.random.normal(k5, (OUTPUT_SIZE, FINAL_FEATURE_SIZE), dtype=jnp.float32) * 0.05
    bt = jax.random.normal(k6, (1, FINAL_FEATURE_SIZE), dtype=jnp.float32) * 0.05

    h, out, t_out = jax.block_until_ready(
        attae_forward(x, we, be, wd, bd, wt, bt))

    h_ref, out_ref, t_ref = attae_reference_bf16(x, we, be, wd, bd, wt, bt)
    assert h.shape == (B, OUTPUT_SIZE)
    assert out.shape == (B, INPUT_SIZE)
    assert t_out.shape == (B, FINAL_FEATURE_SIZE)
    assert jnp.allclose(h, h_ref, atol=1e-2, rtol=1e-2)
    assert jnp.allclose(out, out_ref, atol=1e-2, rtol=1e-2)
    assert jnp.allclose(t_out, t_ref, atol=1e-2, rtol=1e-2)

    print("KERNEL_OK")
</pallas_src>

<mosaic_0001>
module attributes {stable_mosaic.version = 11 : i64} {
  func.func @attae_kernel(%arg0: i32, %arg1: memref<8x256xbf16, #tpu.memory_space<vmem>>, %arg2: memref<256x128xbf16, #tpu.memory_space<vmem>>, %arg3: memref<1x128xf32, #tpu.memory_space<vmem>>, %arg4: memref<128x384xbf16, #tpu.memory_space<vmem>>, %arg5: memref<1x384xf32, #tpu.memory_space<vmem>>, %arg6: memref<8x128xf32, #tpu.memory_space<vmem>>, %arg7: memref<8x256xf32, #tpu.memory_space<vmem>>, %arg8: memref<8x128xf32, #tpu.memory_space<vmem>>) attributes {dimension_semantics = [#tpu.dimension_semantics<parallel>], iteration_bounds = array<i64: 1>, scalar_prefetch = 0 : i64, scratch_operands = 0 : i64, tpu.core_type = #tpu.core_type<tc>, window_params = [{transform_indices = @transform_0, window_bounds = array<i64: 8, 256>}, {pipeline_mode = #tpu.pipeline_mode<synchronous>, transform_indices = @transform_1, window_bounds = array<i64: 256, 128>}, {pipeline_mode = #tpu.pipeline_mode<synchronous>, transform_indices = @transform_2, window_bounds = array<i64: 1, 128>}, {pipeline_mode = #tpu.pipeline_mode<synchronous>, transform_indices = @transform_3, window_bounds = array<i64: 128, 384>}, {pipeline_mode = #tpu.pipeline_mode<synchronous>, transform_indices = @transform_4, window_bounds = array<i64: 1, 384>}, {transform_indices = @transform_5, window_bounds = array<i64: 8, 128>}, {transform_indices = @transform_6, window_bounds = array<i64: 8, 256>}, {transform_indices = @transform_7, window_bounds = array<i64: 8, 128>}]} {
    %c0 = arith.constant 0 : index
    %c0_0 = arith.constant 0 : index
    %0 = vector.load %arg1[%c0, %c0_0] : memref<8x256xbf16, #tpu.memory_space<vmem>>, vector<8x256xbf16>
    %c0_1 = arith.constant 0 : index
    %c0_2 = arith.constant 0 : index
    %1 = vector.load %arg2[%c0_1, %c0_2] : memref<256x128xbf16, #tpu.memory_space<vmem>>, vector<256x128xbf16>
    %cst = arith.constant dense<0.000000e+00> : vector<8x128xf32>
    %2 = tpu.matmul %0, %1, %cst {dimension_numbers = #tpu.dot_dimension_numbers<[1], [0], [0], [1], [0, 0, 1, 1], [], []>} : vector<8x256xbf16>, vector<256x128xbf16>, vector<8x128xf32> -> vector<8x128xf32>
    %c0_3 = arith.constant 0 : index
    %c0_4 = arith.constant 0 : index
    %3 = vector.load %arg3[%c0_3, %c0_4] : memref<1x128xf32, #tpu.memory_space<vmem>>, vector<1x128xf32>
    %4 = vector.broadcast %3 : vector<1x128xf32> to vector<8x128xf32>
    %5 = arith.addf %2, %4 : vector<8x128xf32>
    %cst_5 = arith.constant 0.000000e+00 : f32
    %6 = vector.broadcast %cst_5 : f32 to vector<8x128xf32>
    %7 = arith.maximumf %5, %6 : vector<8x128xf32>
    %c0_6 = arith.constant 0 : index
    %c0_7 = arith.constant 0 : index
    %8 = vector.load %arg6[%c0_6, %c0_7] : memref<8x128xf32, #tpu.memory_space<vmem>>, vector<8x128xf32>
    tpu.vector_store %arg6[%c0_6, %c0_7], %7 {strides = array<i32>} : memref<8x128xf32, #tpu.memory_space<vmem>>, vector<8x128xf32>,
    %9 = arith.truncf %7 : vector<8x128xf32> to vector<8x128xbf16>
    %c0_8 = arith.constant 0 : index
    %c0_9 = arith.constant 0 : index
    %10 = vector.load %arg4[%c0_8, %c0_9] : memref<128x384xbf16, #tpu.memory_space<vmem>>, vector<128x384xbf16>
    %cst_10 = arith.constant dense<0.000000e+00> : vector<8x384xf32>
    %11 = tpu.matmul %9, %10, %cst_10 {dimension_numbers = #tpu.dot_dimension_numbers<[1], [0], [0], [1], [0, 0, 1, 1], [], []>} : vector<8x128xbf16>, vector<128x384xbf16>, vector<8x384xf32> -> vector<8x384xf32>
    %c0_11 = arith.constant 0 : index
    %c0_12 = arith.constant 0 : index
    %12 = vector.load %arg5[%c0_11, %c0_12] : memref<1x384xf32, #tpu.memory_space<vmem>>, vector<1x384xf32>
    %13 = vector.broadcast %12 : vector<1x384xf32> to vector<8x384xf32>
    %14 = arith.addf %11, %13 : vector<8x384xf32>
    %15 = vector.extract_strided_slice %14 {offsets = [0, 0], sizes = [8, 256], strides = [1, 1]} : vector<8x384xf32> to vector<8x256xf32>
    %cst_13 = arith.constant 0.000000e+00 : f32
    %16 = vector.broadcast %cst_13 : f32 to vector<8x256xf32>
    %17 = arith.maximumf %15, %16 : vector<8x256xf32>
    %c0_14 = arith.constant 0 : index
    %c0_15 = arith.constant 0 : index
    %18 = vector.load %arg7[%c0_14, %c0_15] : memref<8x256xf32, #tpu.memory_space<vmem>>, vector<8x256xf32>
    tpu.vector_store %arg7[%c0_14, %c0_15], %17 {strides = array<i32>} : memref<8x256xf32, #tpu.memory_space<vmem>>, vector<8x256xf32>,
    %19 = vector.extract_strided_slice %14 {offsets = [0, 256], sizes = [8, 128], strides = [1, 1]} : vector<8x384xf32> to vector<8x128xf32>
    %20 = math.tanh %19 : vector<8x128xf32>
    %c0_16 = arith.constant 0 : index
    %c0_17 = arith.constant 0 : index
    %21 = vector.load %arg8[%c0_16, %c0_17] : memref<8x128xf32, #tpu.memory_space<vmem>>, vector<8x128xf32>
    tpu.vector_store %arg8[%c0_16, %c0_17], %20 {strides = array<i32>} : memref<8x128xf32, #tpu.memory_space<vmem>>, vector<8x128xf32>,
    return
  }
  func.func @transform_0(%arg0: i32) -> (i32, i32) {
    %c0_i32 = arith.constant 0 : i32
    %c0_i32_0 = arith.constant 0 : i32
    return %arg0, %c0_i32 : i32, i32
  }
  func.func @transform_1(%arg0: i32) -> (i32, i32) {
    %c0_i32 = arith.constant 0 : i32
    %c0_i32_0 = arith.constant 0 : i32
    %c0_i32_1 = arith.constant 0 : i32
    return %c0_i32, %c0_i32_0 : i32, i32
  }
  func.func @transform_2(%arg0: i32) -> (i32, i32) {
    %c0_i32 = arith.constant 0 : i32
    %c0_i32_0 = arith.constant 0 : i32
    %c0_i32_1 = arith.constant 0 : i32
    return %c0_i32, %c0_i32_0 : i32, i32
  }
  func.func @transform_3(%arg0: i32) -> (i32, i32) {
    %c0_i32 = arith.constant 0 : i32
    %c0_i32_0 = arith.constant 0 : i32
    %c0_i32_1 = arith.constant 0 : i32
    return %c0_i32, %c0_i32_0 : i32, i32
  }
  func.func @transform_4(%arg0: i32) -> (i32, i32) {
    %c0_i32 = arith.constant 0 : i32
    %c0_i32_0 = arith.constant 0 : i32
    %c0_i32_1 = arith.constant 0 : i32
    return %c0_i32, %c0_i32_0 : i32, i32
  }
  func.func @transform_5(%arg0: i32) -> (i32, i32) {
    %c0_i32 = arith.constant 0 : i32
    %c0_i32_0 = arith.constant 0 : i32
    return %arg0, %c0_i32 : i32, i32
  }
  func.func @transform_6(%arg0: i32) -> (i32, i32) {
    %c0_i32 = arith.constant 0 : i32
    %c0_i32_0 = arith.constant 0 : i32
    return %arg0, %c0_i32 : i32, i32
  }
  func.func @transform_7(%arg0: i32) -> (i32, i32) {
    %c0_i32 = arith.constant 0 : i32
    %c0_i32_0 = arith.constant 0 : i32
    return %arg0, %c0_i32 : i32, i32
  }
}

</mosaic_0001>

<llo_original>
// kernel: tpu_custom_call.1
$region0: #{tpu_custom_call.1}
  #allocation0 [shape = 'u32[]', space=smem, size = 0x4, offset = 0x4, fixed_abs, tag = 'smem constant byte address 0x4 - core index']
  #allocation1 [shape = 'u32[72,128]{1,0:T(1,128)}', space=vmem, size = 0x9000, scoped, tag = 'internal scratch']
  %s0 = inlined_call_operand.hbm [shape: bf16[8,256], index: 0, kind: input, shape index: {}]
  %s1 = inlined_call_operand.hbm [shape: bf16[256,128], index: 1, kind: input, shape index: {}]
  %s2 = inlined_call_operand.hbm [shape: f32[1,128], index: 2, kind: input, shape index: {}]
  %s3 = inlined_call_operand.hbm [shape: bf16[128,384], index: 3, kind: input, shape index: {}]
  %s4 = inlined_call_operand.vmem [shape: f32[1,384], index: 4, kind: input, shape index: {}]
  %s5 = inlined_call_operand.hbm [shape: f32[8,128], index: 5, kind: output, shape index: {0}]
  %s6 = inlined_call_operand.hbm [shape: f32[8,256], index: 6, kind: output, shape index: {1}]
  %s7 = inlined_call_operand.hbm [shape: f32[8,128], index: 7, kind: output, shape index: {2}]
  %8 = xla_tuple %s5, %s6, %s7
  %s9 = sld [smem:[#allocation0]]
  $region62: #{tpu_custom_call.1} parent=0
    _
  %s11 = ssub.s32 1, %s9
  %s12 = scalar_select 0, %s11, %s9
  $region1: #{tpu_custom_call.1} parent=0
    #allocation2 [shape = 'u8[4096]{0}', space=vmem, size = 0x1000, scoped, tag = 'input window, operand 0, single buffered']
    #allocation3 [shape = 's32[1]{0}', space=sflag, size = 0x4, scoped, tag = 'scoped memory for tpu_custom_call.1']
    #allocation4 [shape = 's32[1]{0}', space=sflag, size = 0x4, scoped, tag = 'scoped memory for tpu_custom_call.1']
    #allocation5 [shape = 'u8[65536]{0}', space=vmem, size = 0x10000, scoped, tag = 'input window, operand 1, single buffered']
    #allocation6 [shape = 's32[1]{0}', space=sflag, size = 0x4, scoped, tag = 'scoped memory for tpu_custom_call.1']
    #allocation7 [shape = 'u8[512]{0}', space=vmem, size = 0x400, scoped, tag = 'input window, operand 2, single buffered']
    #allocation8 [shape = 'u8[98304]{0}', space=vmem, size = 0x18000, scoped, tag = 'input window, operand 3, single buffered']
    #allocation9 [shape = 's32[1]{0}', space=sflag, size = 0x4, scoped, tag = 'scoped memory for tpu_custom_call.1']
    #allocation10 [shape = 'u8[4096]{0}', space=vmem, size = 0x1000, scoped, tag = 'output window, operand 0, single buffered']
    #allocation11 [shape = 'u8[8192]{0}', space=vmem, size = 0x2000, scoped, tag = 'output window, operand 1, single buffered']
    #allocation12 [shape = 's32[1]{0}', space=sflag, size = 0x4, scoped, tag = 'scoped memory for tpu_custom_call.1']
    #allocation13 [shape = 'u8[4096]{0}', space=vmem, size = 0x1000, scoped, tag = 'output window, operand 2, single buffered']
    %13 = vsyncpa [#allocation3], 0
    %14 = vsyncpa [#allocation6], 0
    %15 = vsyncpa [#allocation9], 0
    %16 = vsyncpa [#allocation4], 0
    %17 = vsyncpa [#allocation12], 0
    // Predicated region
    $region2: #{tpu_custom_call.1} parent=1 // pred_check
      _
    $region3: #{tpu_custom_call.1} parent=1 // pred_check_branch
      %19 = sbr.rel (0) target = $region5
    $region4: #{tpu_custom_call.1} parent=1 // pred_region
      %21 = vsyncadd [#allocation3], 0
      %s23 = sshll.u32 %s0, 4
      %s24 = int_to_ptr.hbm [resolvable:$true] %s23
      %s25 = sshll.u32 [#allocation2], 4
      %s26 = int_to_ptr.vmem [resolvable:$true] %s25
      %28 = dma.hbm_to_vmem [thread:$0]  %s24, 128, %s26, [#allocation3]
    $region5: #{tpu_custom_call.1} parent=1 // pred_fallthru
      _
    // Predicated region
    $region6: #{tpu_custom_call.1} parent=1 // pred_check
      _
    $region7: #{tpu_custom_call.1} parent=1 // pred_check_branch
      %30 = sbr.rel (0) target = $region9
    $region8: #{tpu_custom_call.1} parent=1 // pred_region
      %32 = vsyncadd [#allocation6], 0
      %s33 = sshll.u32 %s1, 4
      %s34 = int_to_ptr.hbm [resolvable:$true] %s33
      %s35 = sshll.u32 [#allocation5], 4
      %s36 = int_to_ptr.vmem [resolvable:$true] %s35
      %41 = dma.hbm_to_vmem [thread:$0]  %s34, 2048, %s36, [#allocation6], 64, 64, 4
    $region9: #{tpu_custom_call.1} parent=1 // pred_fallthru
      _
    // Predicated region
    $region10: #{tpu_custom_call.1} parent=1 // pred_check
      _
    $region11: #{tpu_custom_call.1} parent=1 // pred_check_branch
      %43 = sbr.rel (0) target = $region13
    $region12: #{tpu_custom_call.1} parent=1 // pred_region
      %45 = vsyncadd [#allocation6], 0
      %s47 = sshll.u32 %s2, 4
      %s48 = int_to_ptr.hbm [resolvable:$true] %s47
      %s49 = sshll.u32 [#allocation7], 4
      %s50 = int_to_ptr.vmem [resolvable:$true] %s49
      %52 = dma.hbm_to_vmem [thread:$0]  %s48, 16, %s50, [#allocation6]
    $region13: #{tpu_custom_call.1} parent=1 // pred_fallthru
      _
    // Predicated region
    $region14: #{tpu_custom_call.1} parent=1 // pred_check
      _
    $region15: #{tpu_custom_call.1} parent=1 // pred_check_branch
      %54 = sbr.rel (0) target = $region17
    $region16: #{tpu_custom_call.1} parent=1 // pred_region
      %56 = vsyncadd [#allocation9], 0
      %s57 = sshll.u32 %s3, 4
      %s58 = int_to_ptr.hbm [resolvable:$true] %s57
      %s59 = sshll.u32 [#allocation8], 4
      %s60 = int_to_ptr.vmem [resolvable:$true] %s59
      %65 = dma.hbm_to_vmem [thread:$0]  %s58, 3072, %s60, [#allocation9], 192, 192, 12
    $region17: #{tpu_custom_call.1} parent=1 // pred_fallthru
      _
    // Predicated region
    $region18: #{tpu_custom_call.1} parent=1 // pred_check
      _
    $region19: #{tpu_custom_call.1} parent=1 // pred_check_branch
      %67 = sbr.rel (0) target = $region21
    $region20: #{tpu_custom_call.1} parent=1 // pred_region
      _
    $region21: #{tpu_custom_call.1} parent=1 // pred_fallthru
      _
    // Predicated region
    $region22: #{tpu_custom_call.1} parent=1 // pred_check
      _
    $region23: #{tpu_custom_call.1} parent=1 // pred_check_branch
      %69 = sbr.rel (0) target = $region25
    $region24: #{tpu_custom_call.1} parent=1 // pred_region
      %71 = dma.done [#allocation3], 128
    $region25: #{tpu_custom_call.1} parent=1 // pred_fallthru
      _
    // Predicated region
    $region26: #{tpu_custom_call.1} parent=1 // pred_check
      _
    $region27: #{tpu_custom_call.1} parent=1 // pred_check_branch
      %73 = sbr.rel (0) target = $region29
    $region28: #{tpu_custom_call.1} parent=1 // pred_region
      %75 = dma.done [#allocation6], 2048
    $region29: #{tpu_custom_call.1} parent=1 // pred_fallthru
      _
    // Predicated region
    $region30: #{tpu_custom_call.1} parent=1 // pred_check
      _
    $region31: #{tpu_custom_call.1} parent=1 // pred_check_branch
      %77 = sbr.rel (0) target = $region33
    $region32: #{tpu_custom_call.1} parent=1 // pred_region
      %79 = dma.done [#allocation6], 16
    $region33: #{tpu_custom_call.1} parent=1 // pred_fallthru
      _
    // Predicated region
    $region34: #{tpu_custom_call.1} parent=1 // pred_check
      _
    $region35: #{tpu_custom_call.1} parent=1 // pred_check_branch
      %81 = sbr.rel (0) target = $region37
    $region36: #{tpu_custom_call.1} parent=1 // pred_region
      %83 = dma.done [#allocation9], 3072
    $region37: #{tpu_custom_call.1} parent=1 // pred_fallthru
      _
    %v84 = vld [vmem:[#allocation2] sm:$0xff]
    %v85 = vld [vmem:[#allocation5] sm:$0xf]
    %v86 = vld [vmem:[#allocation5 + $0x4] sm:$0xf]
    %v87 = vld [vmem:[#allocation5 + $0x8] sm:$0xf]
    %v88 = vld [vmem:[#allocation5 + $0xc] sm:$0xf]
    %v89 = vld [vmem:[#allocation5 + $0x10] sm:$0xf]
    %v90 = vld [vmem:[#allocation5 + $0x14] sm:$0xf]
    %v91 = vld [vmem:[#allocation5 + $0x18] sm:$0xf]
    %v92 = vld [vmem:[#allocation5 + $0x1c] sm:$0xf]
    %v93 = vld [vmem:[#allocation5 + $0x20] sm:$0xf]
    %v94 = vld [vmem:[#allocation5 + $0x24] sm:$0xf]
    %v95 = vld [vmem:[#allocation5 + $0x28] sm:$0xf]
    %v96 = vld [vmem:[#allocation5 + $0x2c] sm:$0xf]
    %v97 = vld [vmem:[#allocation5 + $0x30] sm:$0xf]
    %v98 = vld [vmem:[#allocation5 + $0x34] sm:$0xf]
    %v99 = vld [vmem:[#allocation5 + $0x38] sm:$0xf]
    %v100 = vld [vmem:[#allocation5 + $0x3c] sm:$0xf]
    %v101 = vld [vmem:[#allocation5 + $0x40] sm:$0xf]
    %v102 = vld [vmem:[#allocation5 + $0x44] sm:$0xf]
    %v103 = vld [vmem:[#allocation5 + $0x48] sm:$0xf]
    %v104 = vld [vmem:[#allocation5 + $0x4c] sm:$0xf]
    %v105 = vld [vmem:[#allocation5 + $0x50] sm:$0xf]
    %v106 = vld [vmem:[#allocation5 + $0x54] sm:$0xf]
    %v107 = vld [vmem:[#allocation5 + $0x58] sm:$0xf]
    %v108 = vld [vmem:[#allocation5 + $0x5c] sm:$0xf]
    %v109 = vld [vmem:[#allocation5 + $0x60] sm:$0xf]
    %v110 = vld [vmem:[#allocation5 + $0x64] sm:$0xf]
    %v111 = vld [vmem:[#allocation5 + $0x68] sm:$0xf]
    %v112 = vld [vmem:[#allocation5 + $0x6c] sm:$0xf]
    %v113 = vld [vmem:[#allocation5 + $0x70] sm:$0xf]
    %v114 = vld [vmem:[#allocation5 + $0x74] sm:$0xf]
    %v115 = vld [vmem:[#allocation5 + $0x78] sm:$0xf]
    %v116 = vld [vmem:[#allocation5 + $0x7c] sm:$0xf]
    %v117 = vld [vmem:[#allocation7] sm:$0x1]
    %v119 = vperm.slane %v117, 0
    %v122 = vunpack.c.l.b16 %v84
    %v123 = vunpack.c.h.b16 %v84
    %v124 = vpack.c.b16 %v122, %v122
    %v125 = vpack.c.b16 %v123, %v123
    %v160 = vunpack.c.l.b16 %v85
    %v161 = vunpack.c.l.b16 %v86
    %v162 = vunpack.c.l.b16 %v87
    %v163 = vunpack.c.l.b16 %v88
    %v164 = vunpack.c.l.b16 %v89
    %v165 = vunpack.c.l.b16 %v90
    %v166 = vunpack.c.l.b16 %v91
    %v167 = vunpack.c.l.b16 %v92
    %v168 = vunpack.c.l.b16 %v93
    %v169 = vunpack.c.l.b16 %v94
    %v170 = vunpack.c.l.b16 %v95
    %v171 = vunpack.c.l.b16 %v96
    %v172 = vunpack.c.l.b16 %v97
    %v173 = vunpack.c.l.b16 %v98
    %v174 = vunpack.c.l.b16 %v99
    %v175 = vunpack.c.l.b16 %v100
    %v176 = vunpack.c.l.b16 %v101
    %v177 = vunpack.c.l.b16 %v102
    %v178 = vunpack.c.l.b16 %v103
    %v179 = vunpack.c.l.b16 %v104
    %v180 = vunpack.c.l.b16 %v105
    %v181 = vunpack.c.l.b16 %v106
    %v182 = vunpack.c.l.b16 %v107
    %v183 = vunpack.c.l.b16 %v108
    %v184 = vunpack.c.l.b16 %v109
    %v185 = vunpack.c.l.b16 %v110
    %v186 = vunpack.c.l.b16 %v111
    %v187 = vunpack.c.l.b16 %v112
    %v188 = vunpack.c.l.b16 %v113
    %v189 = vunpack.c.l.b16 %v114
    %v190 = vunpack.c.l.b16 %v115
    %v191 = vunpack.c.l.b16 %v116
    %v192 = vpack.c.b16 %v161, %v160
    %v193 = vpack.c.b16 %v163, %v162
    %v194 = vpack.c.b16 %v165, %v164
    %v195 = vpack.c.b16 %v167, %v166
    %v196 = vpack.c.b16 %v169, %v168
    %v197 = vpack.c.b16 %v171, %v170
    %v198 = vpack.c.b16 %v173, %v172
    %v199 = vpack.c.b16 %v175, %v174
    %v200 = vpack.c.b16 %v177, %v176
    %v201 = vpack.c.b16 %v179, %v178
    %v202 = vpack.c.b16 %v181, %v180
    %v203 = vpack.c.b16 %v183, %v182
    %v204 = vpack.c.b16 %v185, %v184
    %v205 = vpack.c.b16 %v187, %v186
    %v206 = vpack.c.b16 %v189, %v188
    %v207 = vpack.c.b16 %v191, %v190
    %224 = vmatpush.bf16.msra.mxu0 %v199
    %225 = vmatpush.bf16.msra.mxu0 %v198
    %226 = vmatpush.bf16.msra.mxu0 %v197
    %227 = vmatpush.bf16.msra.mxu0 %v196
    %228 = vmatpush.bf16.msra.mxu0 %v195
    %229 = vmatpush.bf16.msra.mxu0 %v194
    %230 = vmatpush.bf16.msra.mxu0 %v193
    %231 = vmatpush.bf16.msra.mxu0 %v192
    %232 = vmatmul.bf16.gmra.mxu0 %v124
    %v233 = vpop.f32.mrf.mxu0
    %v234 = vadd.f32 %v119, %v233
    %v235 = vpop.f32.mrf.mxu0
    %236 = vdwg.mxu0
    %237 = vmatpush.bf16.msra.mxu0 %v207
    %238 = vmatpush.bf16.msra.mxu0 %v206
    %239 = vmatpush.bf16.msra.mxu0 %v205
    %240 = vmatpush.bf16.msra.mxu0 %v204
    %241 = vmatpush.bf16.msra.mxu0 %v203
    %242 = vmatpush.bf16.msra.mxu0 %v202
    %243 = vmatpush.bf16.msra.mxu0 %v201
    %244 = vmatpush.bf16.msra.mxu0 %v200
    %245 = vmatmul.bf16.gmra.mxu0 %v125
    %v246 = vpop.f32.mrf.mxu0
    %v247 = vadd.f32 %v234, %v246
    %v248 = vpop.f32.mrf.mxu0
    %249 = vdwg.mxu0
    %v250 = vmax.f32 %v247, 0.0
    %251 = vst [vmem:[#allocation10] sm:$0xff] %v250
    %v252 = vpack.c.bf16 %v250, %v250
    %v253 = vld [vmem:[#allocation8] sm:$0xff]
    %v254 = vld [vmem:[#allocation8 + $0x8] sm:$0xf]
    %v255 = vld [vmem:[#allocation8 + $0xc] sm:$0xff]
    %v256 = vld [vmem:[#allocation8 + $0x14] sm:$0xf]
    %v257 = vld [vmem:[#allocation8 + $0x18] sm:$0xff]
    %v258 = vld [vmem:[#allocation8 + $0x20] sm:$0xf]
    %v259 = vld [vmem:[#allocation8 + $0x24] sm:$0xff]
    %v260 = vld [vmem:[#allocation8 + $0x2c] sm:$0xf]
    %v261 = vld [vmem:[#allocation8 + $0x30] sm:$0xff]
    %v262 = vld [vmem:[#allocation8 + $0x38] sm:$0xf]
    %v263 = vld [vmem:[#allocation8 + $0x3c] sm:$0xff]
    %v264 = vld [vmem:[#allocation8 + $0x44] sm:$0xf]
    %v265 = vld [vmem:[#allocation8 + $0x48] sm:$0xff]
    %v266 = vld [vmem:[#allocation8 + $0x50] sm:$0xf]
    %v267 = vld [vmem:[#allocation8 + $0x54] sm:$0xff]
    %v268 = vld [vmem:[#allocation8 + $0x5c] sm:$0xf]
    %v269 = vld [vmem:[#allocation8 + $0x60] sm:$0xff]
    %v270 = vld [vmem:[#allocation8 + $0x68] sm:$0xf]
    %v271 = vld [vmem:[#allocation8 + $0x6c] sm:$0xff]
    %v272 = vld [vmem:[#allocation8 + $0x74] sm:$0xf]
    %v273 = vld [vmem:[#allocation8 + $0x78] sm:$0xff]
    %v274 = vld [vmem:[#allocation8 + $0x80] sm:$0xf]
    %v275 = vld [vmem:[#allocation8 + $0x84] sm:$0xff]
    %v276 = vld [vmem:[#allocation8 + $0x8c] sm:$0xf]
    %v277 = vld [vmem:[#allocation8 + $0x90] sm:$0xff]
    %v278 = vld [vmem:[#allocation8 + $0x98] sm:$0xf]
    %v279 = vld [vmem:[#allocation8 + $0x9c] sm:$0xff]
    %v280 = vld [vmem:[#allocation8 + $0xa4] sm:$0xf]
    %v281 = vld [vmem:[#allocation8 + $0xa8] sm:$0xff]
    %v282 = vld [vmem:[#allocation8 + $0xb0] sm:$0xf]
    %v283 = vld [vmem:[#allocation8 + $0xb4] sm:$0xff]
    %v284 = vld [vmem:[#allocation8 + $0xbc] sm:$0xf]
    %v285 = vld [vmem:[%s4] sm:$0x7]
    %v287 = vperm.slane %v285, 0
    %v288 = vperm.slane %v285, 1
    %v289 = vperm.slane %v285, 2
    %v325 = vunpack.c.l.b16 %v253
    %v326 = vunpack.c.h.b16 %v253
    %v327 = vunpack.c.l.b16 %v254
    %v328 = vunpack.c.l.b16 %v255
    %v329 = vunpack.c.h.b16 %v255
    %v330 = vunpack.c.l.b16 %v256
    %v331 = vunpack.c.l.b16 %v257
    %v332 = vunpack.c.h.b16 %v257
    %v333 = vunpack.c.l.b16 %v258
    %v334 = vunpack.c.l.b16 %v259
    %v335 = vunpack.c.h.b16 %v259
    %v336 = vunpack.c.l.b16 %v260
    %v337 = vunpack.c.l.b16 %v261
    %v338 = vunpack.c.h.b16 %v261
    %v339 = vunpack.c.l.b16 %v262
    %v340 = vunpack.c.l.b16 %v263
    %v341 = vunpack.c.h.b16 %v263
    %v342 = vunpack.c.l.b16 %v264
    %v343 = vunpack.c.l.b16 %v265
    %v344 = vunpack.c.h.b16 %v265
    %v345 = vunpack.c.l.b16 %v266
    %v346 = vunpack.c.l.b16 %v267
    %v347 = vunpack.c.h.b16 %v267
    %v348 = vunpack.c.l.b16 %v268
    %v349 = vunpack.c.l.b16 %v269
    %v350 = vunpack.c.h.b16 %v269
    %v351 = vunpack.c.l.b16 %v270
    %v352 = vunpack.c.l.b16 %v271
    %v353 = vunpack.c.h.b16 %v271
    %v354 = vunpack.c.l.b16 %v272
    %v355 = vunpack.c.l.b16 %v273
    %v356 = vunpack.c.h.b16 %v273
    %v357 = vunpack.c.l.b16 %v274
    %v358 = vunpack.c.l.b16 %v275
    %v359 = vunpack.c.h.b16 %v275
    %v360 = vunpack.c.l.b16 %v276
    %v361 = vunpack.c.l.b16 %v277
    %v362 = vunpack.c.h.b16 %v277
    %v363 = vunpack.c.l.b16 %v278
    %v364 = vunpack.c.l.b16 %v279
    %v365 = vunpack.c.h.b16 %v279
    %v366 = vunpack.c.l.b16 %v280
    %v367 = vunpack.c.l.b16 %v281
    %v368 = vunpack.c.h.b16 %v281
    %v369 = vunpack.c.l.b16 %v282
    %v370 = vunpack.c.l.b16 %v283
    %v371 = vunpack.c.h.b16 %v283
    %v372 = vunpack.c.l.b16 %v284
    %v373 = vpack.c.b16 %v328, %v325
    %v374 = vpack.c.b16 %v329, %v326
    %v375 = vpack.c.b16 %v330, %v327
    %v376 = vpack.c.b16 %v334, %v331
    %v377 = vpack.c.b16 %v335, %v332
    %v378 = vpack.c.b16 %v336, %v333
    %v379 = vpack.c.b16 %v340, %v337
    %v380 = vpack.c.b16 %v341, %v338
    %v381 = vpack.c.b16 %v342, %v339
    %v382 = vpack.c.b16 %v346, %v343
    %v383 = vpack.c.b16 %v347, %v344
    %v384 = vpack.c.b16 %v348, %v345
    %v385 = vpack.c.b16 %v352, %v349
    %v386 = vpack.c.b16 %v353, %v350
    %v387 = vpack.c.b16 %v354, %v351
    %v388 = vpack.c.b16 %v358, %v355
    %v389 = vpack.c.b16 %v359, %v356
    %v390 = vpack.c.b16 %v360, %v357
    %v391 = vpack.c.b16 %v364, %v361
    %v392 = vpack.c.b16 %v365, %v362
    %v393 = vpack.c.b16 %v366, %v363
    %v394 = vpack.c.b16 %v370, %v367
    %v395 = vpack.c.b16 %v371, %v368
    %v396 = vpack.c.b16 %v372, %v369
    %421 = vmatpush.bf16.msra.mxu0 %v394
    %422 = vmatpush.bf16.msra.mxu0 %v391
    %423 = vmatpush.bf16.msra.mxu0 %v388
    %424 = vmatpush.bf16.msra.mxu0 %v385
    %425 = vmatpush.bf16.msra.mxu0 %v382
    %426 = vmatpush.bf16.msra.mxu0 %v379
    %427 = vmatpush.bf16.msra.mxu0 %v376
    %428 = vmatpush.bf16.msra.mxu0 %v373
    %429 = vmatmul.bf16.gmra.mxu0 %v252
    %v430 = vpop.f32.mrf.mxu0
    %v431 = vadd.f32 %v287, %v430
    %v432 = vpop.f32.mrf.mxu0
    %433 = vdwg.mxu0
    %434 = vmatpush.bf16.msra.mxu0 %v395
    %435 = vmatpush.bf16.msra.mxu0 %v392
    %436 = vmatpush.bf16.msra.mxu0 %v389
    %437 = vmatpush.bf16.msra.mxu0 %v386
    %438 = vmatpush.bf16.msra.mxu0 %v383
    %439 = vmatpush.bf16.msra.mxu0 %v380
    %440 = vmatpush.bf16.msra.mxu0 %v377
    %441 = vmatpush.bf16.msra.mxu0 %v374
    %442 = vmatmul.bf16.gmra.mxu0 %v252
    %v443 = vpop.f32.mrf.mxu0
    %v444 = vadd.f32 %v288, %v443
    %v445 = vpop.f32.mrf.mxu0
    %446 = vdwg.mxu0
    %447 = vmatpush.bf16.msra.mxu0 %v396
    %448 = vmatpush.bf16.msra.mxu0 %v393
    %449 = vmatpush.bf16.msra.mxu0 %v390
    %450 = vmatpush.bf16.msra.mxu0 %v387
    %451 = vmatpush.bf16.msra.mxu0 %v384
    %452 = vmatpush.bf16.msra.mxu0 %v381
    %453 = vmatpush.bf16.msra.mxu0 %v378
    %454 = vmatpush.bf16.msra.mxu0 %v375
    %455 = vmatmul.bf16.gmra.mxu0 %v252
    %v456 = vpop.f32.mrf.mxu0
    %v457 = vadd.f32 %v289, %v456
    %v458 = vpop.f32.mrf.mxu0
    %459 = vdwg.mxu0
    %v460 = vmax.f32 %v431, 0.0
    %v461 = vmax.f32 %v444, 0.0
    %462 = vst [vmem:[#allocation11] sm:$0xff] %v460
    %463 = vst [vmem:[#allocation11 + $0x8] sm:$0xff] %v461
    %v464 = vtanh.pop %v457
    %465 = vst [vmem:[#allocation13] sm:$0xff] %v464
    // Predicated region
    $region38: #{tpu_custom_call.1} parent=1 // pred_check
      _
    $region39: #{tpu_custom_call.1} parent=1 // pred_check_branch
      %467 = sbr.rel (0) target = $region41
    $region40: #{tpu_custom_call.1} parent=1 // pred_region
      %469 = vsyncadd [#allocation4], 0
      %s471 = sshll.u32 [#allocation10], 4
      %s472 = int_to_ptr.vmem [resolvable:$true] %s471
      %s473 = sshll.u32 %s5, 4
      %s474 = int_to_ptr.hbm [resolvable:$true] %s473
      %476 = dma.vmem_to_hbm [thread:$0]  %s472, 128, %s474, [#allocation4]
    $region41: #{tpu_custom_call.1} parent=1 // pred_fallthru
      _
    // Predicated region
    $region42: #{tpu_custom_call.1} parent=1 // pred_check
      _
    $region43: #{tpu_custom_call.1} parent=1 // pred_check_branch
      %478 = sbr.rel (0) target = $region45
    $region44: #{tpu_custom_call.1} parent=1 // pred_region
      %480 = vsyncadd [#allocation12], 0
      %s482 = sshll.u32 [#allocation11], 4
      %s483 = int_to_ptr.vmem [resolvable:$true] %s482
      %s484 = sshll.u32 %s6, 4
      %s485 = int_to_ptr.hbm [resolvable:$true] %s484
      %487 = dma.vmem_to_hbm [thread:$0]  %s483, 256, %s485, [#allocation12]
    $region45: #{tpu_custom_call.1} parent=1 // pred_fallthru
      _
    // Predicated region
    $region46: #{tpu_custom_call.1} parent=1 // pred_check
      _
    $region47: #{tpu_custom_call.1} parent=1 // pred_check_branch
      %489 = sbr.rel (0) target = $region49
    $region48: #{tpu_custom_call.1} parent=1 // pred_region
      %491 = vsyncadd [#allocation12], 0
      %s493 = sshll.u32 [#allocation13], 4
      %s494 = int_to_ptr.vmem [resolvable:$true] %s493
      %s495 = sshll.u32 %s7, 4
      %s496 = int_to_ptr.hbm [resolvable:$true] %s495
      %498 = dma.vmem_to_hbm [thread:$0]  %s494, 128, %s496, [#allocation12]
    $region49: #{tpu_custom_call.1} parent=1 // pred_fallthru
      _
    // Predicated region
    $region50: #{tpu_custom_call.1} parent=1 // pred_check
      _
    $region51: #{tpu_custom_call.1} parent=1 // pred_check_branch
      %500 = sbr.rel (0) target = $region53
    $region52: #{tpu_custom_call.1} parent=1 // pred_region
      %502 = dma.done [#allocation4], 128
    $region53: #{tpu_custom_call.1} parent=1 // pred_fallthru
      _
    // Predicated region
    $region54: #{tpu_custom_call.1} parent=1 // pred_check
      _
    $region55: #{tpu_custom_call.1} parent=1 // pred_check_branch
      %504 = sbr.rel (0) target = $region57
    $region56: #{tpu_custom_call.1} parent=1 // pred_region
      %506 = dma.done [#allocation12], 256
    $region57: #{tpu_custom_call.1} parent=1 // pred_fallthru
      _
    // Predicated region
    $region58: #{tpu_custom_call.1} parent=1 // pred_check
      _
    $region59: #{tpu_custom_call.1} parent=1 // pred_check_branch
      %508 = sbr.rel (0) target = $region61
    $region60: #{tpu_custom_call.1} parent=1 // pred_region
      %510 = dma.done [#allocation12], 128
    $region61: #{tpu_custom_call.1} parent=1 // pred_fallthru
      _
    %511 = vsyncpa [#allocation3], 1
    %512 = vsyncpa [#allocation6], 1
    %513 = vsyncpa [#allocation9], 1
    %514 = vsyncpa [#allocation4], 1
    %515 = vsyncpa [#allocation12], 1

</llo_original>
